<compile_context>
chip_gen: v6e
topology: v6e:2x2x1
jax: 0.10.0
libtpu: 0.0.40
codegen_flags: <defaults>
</compile_context>

<pallas_src>
import jax
import jax.numpy as jnp
from jax.experimental import pallas as pl
from jax.experimental.pallas import tpu as pltpu

IGNORE_INDEX = -100


def _make_ce_kernel(n_rows, n_classes, tile_n, tile_c, c_rem):
    """Build the CE kernel closed over the static problem/tile sizes.

    c_rem: number of valid columns in the last class tile (== tile_c when the
    class dimension divides evenly, i.e. no padding mask is ever needed).
    """
    needs_col_mask = c_rem != tile_c

    def kernel(logits_ref, tgt_ref, loss_ref, m_ref, l_ref, picked_ref):
        i = pl.program_id(0)              # row-tile index   ("parallel")
        cb = pl.program_id(1)             # class-tile index ("arbitrary", last)
        n_ctiles = pl.num_programs(1)

        # ---- reset per-row online-logsumexp state at the first class tile ----
        @pl.when(cb == 0)
        def _():
            m_ref[...] = jnp.full_like(m_ref, -jnp.inf)
            l_ref[...] = jnp.zeros_like(l_ref)
            picked_ref[...] = jnp.zeros_like(picked_ref)

        x_in = logits_ref[...]                         # (tn, tc) native dtype
        t = tgt_ref[...]                               # (tn, 1)  int32

        # Local column index within the tile; compare against (t - cb*tile_c)
        # so the global-index add is a per-row (tn,1) op, not per-element.
        local_col = jax.lax.broadcasted_iota(jnp.int32, x_in.shape, 1)
        t_local = t - cb * tile_c

        # Target logit, picked in the *native* dtype (bf16 VALU packs 2/lane on
        # v6e/v7x).  Only one element per row is non-zero, so the row-sum is
        # exact even in bf16; padded garbage columns never match a valid target.
        picked_ref[...] += jnp.sum(
            jnp.where(local_col == t_local, x_in, jnp.zeros_like(x_in)),
            axis=-1, keepdims=True).astype(jnp.float32)

        # Cast per tile inside VMEM; HBM traffic stays in the input dtype.
        x = x_in.astype(jnp.float32)

        def lse_update(xm):
            m_prev = m_ref[...]
            m_new = jnp.maximum(m_prev, jnp.max(xm, axis=-1, keepdims=True))
            l_ref[...] = (l_ref[...] * jnp.exp(m_prev - m_new)
                          + jnp.sum(jnp.exp(xm - m_new), axis=-1, keepdims=True))
            m_ref[...] = m_new

        if not needs_col_mask:
            # No class padding anywhere: skip the pad compare+select entirely.
            lse_update(x)
        else:
            # Interior class tiles: unmasked fast path (saves ~2 VALU ops/elem).
            @pl.when(cb < n_ctiles - 1)
            def _():
                lse_update(x)

            # Last (partial) class tile: mask padded columns to -inf.  c_rem is
            # static, so this is a compare against a constant.
            @pl.when(cb == n_ctiles - 1)
            def _():
                lse_update(jnp.where(local_col < c_rem, x, -jnp.inf))

        # ---- finalize this row tile after the last class tile ----
        @pl.when(cb == n_ctiles - 1)
        def _():
            row = i * tile_n + jax.lax.broadcasted_iota(jnp.int32, (tile_n, 1), 0)
            valid = jnp.logical_and(t != IGNORE_INDEX, row < n_rows)
            loss = m_ref[...] + jnp.log(l_ref[...]) - picked_ref[...]
            # where() also kills NaNs coming from garbage in padded rows.
            loss_ref[...] = jnp.where(valid, loss, 0.0)

    return kernel


def cross_entropy_loss(logits, targets, *, tile_n=256, tile_c=4096,
                       vmem_limit_bytes=48 * 1024 * 1024):
    """Equivalent to nn.CrossEntropyLoss()(logits, targets) with defaults.

    logits : (N, C) or (N, C, d1, ..., dk) float (f32 / bf16, kept in HBM dtype)
    targets: (N,)   or (N, d1, ..., dk)    integer class indices; -100 = ignore
    """
    if logits.ndim > 2:
        # (N, C, *spatial) -> (N * prod(spatial), C); targets flattened to match.
        c_dim = logits.shape[1]
        logits = jnp.moveaxis(logits, 1, -1).reshape(-1, c_dim)
        targets = targets.reshape(-1)

    n, c = logits.shape
    tgt = targets.astype(jnp.int32).reshape(n, 1)

    # Full-dim blocks for small problems (always layout-legal), otherwise
    # 256 x 4096 => 2 MiB (bf16) / 4 MiB (f32) HBM per grid step, amortizing
    # the ~0.35 us step overhead while staying inside v7x's 64 MiB VMEM with
    # double buffering + f32 temporaries.
    tn = n if n <= tile_n else tile_n
    tc = c if c <= tile_c else tile_c
    n_tiles = pl.cdiv(n, tn)
    c_tiles = pl.cdiv(c, tc)
    c_rem = c - (c_tiles - 1) * tc          # valid cols in the last class tile

    kernel = _make_ce_kernel(n, c, tn, tc, c_rem)

    per_row_loss = pl.pallas_call(
        kernel,
        out_shape=jax.ShapeDtypeStruct((n, 1), jnp.float32),
        grid_spec=pltpu.PrefetchScalarGridSpec(
            num_scalar_prefetch=0,
            grid=(n_tiles, c_tiles),
            in_specs=[
                pl.BlockSpec((tn, tc), lambda i, cb: (i, cb)),   # logits tile
                pl.BlockSpec((tn, 1), lambda i, cb: (i, 0)),     # targets tile
            ],
            out_specs=pl.BlockSpec((tn, 1), lambda i, cb: (i, 0)),  # per-row loss
            scratch_shapes=[
                pltpu.VMEM((tn, 1), jnp.float32),   # running max  m
                pltpu.VMEM((tn, 1), jnp.float32),   # running sum  l
                pltpu.VMEM((tn, 1), jnp.float32),   # picked target logit
            ],
        ),
        compiler_params=pltpu.CompilerParams(
            # Row tiles are independent (per-row-tile outputs) -> "parallel"
            # (megacore sharding on v7x).  Class axis carries the online
            # logsumexp state -> "arbitrary", and it is last.
            dimension_semantics=("parallel", "arbitrary"),
            vmem_limit_bytes=vmem_limit_bytes,
        ),
    )(logits, tgt)

    # reduction='mean': sum(per-sample loss) / count(non-ignored targets).
    # (NaN if every target is ignore_index -- matches PyTorch.)
    valid_count = jnp.sum((targets != IGNORE_INDEX).astype(jnp.float32))
    return jnp.sum(per_row_loss) / valid_count


if __name__ == "__main__":
    key = jax.random.PRNGKey(0)

    def reference(logits, targets):
        if logits.ndim > 2:
            c_dim = logits.shape[1]
            logits = jnp.moveaxis(logits, 1, -1).reshape(-1, c_dim)
            targets = targets.reshape(-1)
        lg = logits.astype(jnp.float32)
        n = lg.shape[0]
        lse = jax.nn.logsumexp(lg, axis=-1)
        valid = targets != IGNORE_INDEX
        safe_t = jnp.where(valid, targets, 0)
        picked = lg[jnp.arange(n), safe_t]
        return jnp.sum(jnp.where(valid, lse - picked, 0.0)) / jnp.sum(valid)

    ok = True

    # Case 1: small single-tile f32 problem with an ignored row.
    k1, k2, key = jax.random.split(key, 3)
    N, C = 8, 32
    logits = jax.random.normal(k1, (N, C), dtype=jnp.float32)
    targets = jax.random.randint(k2, (N,), 0, C, dtype=jnp.int32)
    targets = targets.at[3].set(IGNORE_INDEX)
    out = cross_entropy_loss(logits, targets)
    jax.block_until_ready(out)
    ok &= bool(jnp.allclose(out, reference(logits, targets), atol=2e-5, rtol=2e-5))

    # Case 2: multiple row tiles AND multiple class tiles with partial edge
    # tiles (tile_n=8, tile_c=128 override keeps shapes small) -> exercises the
    # online logsumexp, the masked last class tile and the row-padding mask.
    k1, k2, key = jax.random.split(key, 3)
    N, C = 20, 320
    logits = jax.random.normal(k1, (N, C), dtype=jnp.float32)
    targets = jax.random.randint(k2, (N,), 0, C, dtype=jnp.int32)
    targets = targets.at[0].set(IGNORE_INDEX)
    out = cross_entropy_loss(logits, targets, tile_n=8, tile_c=128)
    jax.block_until_ready(out)
    ok &= bool(jnp.allclose(out, reference(logits, targets), atol=2e-5, rtol=2e-5))

    # Case 3: bf16 logits stay bf16 in HBM; pick chain runs in bf16 in-kernel.
    k1, k2, key = jax.random.split(key, 3)
    N, C = 64, 160
    logits = jax.random.normal(k1, (N, C), dtype=jnp.float32).astype(jnp.bfloat16)
    targets = jax.random.randint(k2, (N,), 0, C, dtype=jnp.int32)
    out = cross_entropy_loss(logits, targets)
    jax.block_until_ready(out)
    ok &= bool(jnp.allclose(out, reference(logits, targets), atol=1e-4, rtol=1e-4))

    # Case 4: (N, C, d1) spatial layout, flattened in the wrapper.
    k1, k2, key = jax.random.split(key, 3)
    N, C, D1 = 2, 6, 4
    logits = jax.random.normal(k1, (N, C, D1), dtype=jnp.float32)
    targets = jax.random.randint(k2, (N, D1), 0, C, dtype=jnp.int32)
    targets = targets.at[1, 2].set(IGNORE_INDEX)
    out = cross_entropy_loss(logits, targets)
    jax.block_until_ready(out)
    ok &= bool(jnp.allclose(out, reference(logits, targets), atol=2e-5, rtol=2e-5))

    assert ok, "Pallas cross-entropy does not match the JAX reference"
    print("KERNEL_OK")
</pallas_src>

<mosaic_0001>
module attributes {stable_mosaic.version = 11 : i64} {
  func.func @kernel(%arg0: i32, %arg1: i32, %arg2: memref<8x32xf32, #tpu.memory_space<vmem>>, %arg3: memref<8x1xi32, #tpu.memory_space<vmem>>, %arg4: memref<8x1xf32, #tpu.memory_space<vmem>>, %arg5: memref<8x1xf32, #tpu.memory_space<vmem>>, %arg6: memref<8x1xf32, #tpu.memory_space<vmem>>, %arg7: memref<8x1xf32, #tpu.memory_space<vmem>>) attributes {dimension_semantics = [#tpu.dimension_semantics<parallel>, #tpu.dimension_semantics<arbitrary>], iteration_bounds = array<i64: 1, 1>, scalar_prefetch = 0 : i64, scratch_operands = 3 : i64, tpu.core_type = #tpu.core_type<tc>, window_params = [{transform_indices = @transform_0, window_bounds = array<i64: 8, 32>}, {transform_indices = @transform_1, window_bounds = array<i64: 8, 1>}, {transform_indices = @transform_2, window_bounds = array<i64: 8, 1>}]} {
    %c0_i32 = arith.constant 0 : i32
    %0 = arith.cmpi eq, %arg1, %c0_i32 : i32
    %1 = arith.extui %0 : i1 to i32
    %c0_i32_0 = arith.constant 0 : i32
    %2 = arith.cmpi ne, %1, %c0_i32_0 : i32
    scf.if %2 {
      %cst_21 = arith.constant 0xFF800000 : f32
      %37 = vector.broadcast %cst_21 : f32 to vector<8x1xf32>
      %c0_22 = arith.constant 0 : index
      %c0_23 = arith.constant 0 : index
      %38 = vector.load %arg5[%c0_22, %c0_23] : memref<8x1xf32, #tpu.memory_space<vmem>>, vector<8x1xf32>
      tpu.vector_store %arg5[%c0_22, %c0_23], %37 {strides = array<i32>} : memref<8x1xf32, #tpu.memory_space<vmem>>, vector<8x1xf32>,
      %cst_24 = arith.constant 0.000000e+00 : f32
      %39 = vector.broadcast %cst_24 : f32 to vector<8x1xf32>
      %c0_25 = arith.constant 0 : index
      %c0_26 = arith.constant 0 : index
      %40 = vector.load %arg6[%c0_25, %c0_26] : memref<8x1xf32, #tpu.memory_space<vmem>>, vector<8x1xf32>
      tpu.vector_store %arg6[%c0_25, %c0_26], %39 {strides = array<i32>} : memref<8x1xf32, #tpu.memory_space<vmem>>, vector<8x1xf32>,
      %cst_27 = arith.constant 0.000000e+00 : f32
      %41 = vector.broadcast %cst_27 : f32 to vector<8x1xf32>
      %c0_28 = arith.constant 0 : index
      %c0_29 = arith.constant 0 : index
      %42 = vector.load %arg7[%c0_28, %c0_29] : memref<8x1xf32, #tpu.memory_space<vmem>>, vector<8x1xf32>
      tpu.vector_store %arg7[%c0_28, %c0_29], %41 {strides = array<i32>} : memref<8x1xf32, #tpu.memory_space<vmem>>, vector<8x1xf32>,
    } else {
    }
    %c0 = arith.constant 0 : index
    %c0_1 = arith.constant 0 : index
    %3 = vector.load %arg2[%c0, %c0_1] : memref<8x32xf32, #tpu.memory_space<vmem>>, vector<8x32xf32>
    %c0_2 = arith.constant 0 : index
    %c0_3 = arith.constant 0 : index
    %4 = vector.load %arg3[%c0_2, %c0_3] : memref<8x1xi32, #tpu.memory_space<vmem>>, vector<8x1xi32>
    %5 = tpu.iota {dimensions = array<i32: 1>} : vector<8x32xi32>
    %c32_i32 = arith.constant 32 : i32
    %6 = arith.muli %arg1, %c32_i32 : i32
    %7 = vector.broadcast %6 : i32 to vector<8x1xi32>
    %8 = arith.subi %4, %7 : vector<8x1xi32>
    %c0_4 = arith.constant 0 : index
    %c0_5 = arith.constant 0 : index
    %9 = vector.load %arg7[%c0_4, %c0_5] : memref<8x1xf32, #tpu.memory_space<vmem>>, vector<8x1xf32>
    %10 = vector.broadcast %8 : vector<8x1xi32> to vector<8x32xi32>
    %11 = arith.cmpi eq, %5, %10 : vector<8x32xi32>
    %cst = arith.constant 0.000000e+00 : f32
    %12 = vector.broadcast %cst : f32 to vector<8x32xf32>
    %13 = arith.select %11, %3, %12 : vector<8x32xi1>, vector<8x32xf32>
    %cst_6 = arith.constant dense<0.000000e+00> : vector<8xf32>
    %14 = vector.multi_reduction <add>, %13, %cst_6 [1] : vector<8x32xf32> to vector<8xf32>
    %15 = vector.shape_cast %14 : vector<8xf32> to vector<8x1xf32>
    %16 = arith.addf %9, %15 : vector<8x1xf32>
    %c0_7 = arith.constant 0 : index
    %c0_8 = arith.constant 0 : index
    %17 = vector.load %arg7[%c0_7, %c0_8] : memref<8x1xf32, #tpu.memory_space<vmem>>, vector<8x1xf32>
    tpu.vector_store %arg7[%c0_7, %c0_8], %16 {strides = array<i32>} : memref<8x1xf32, #tpu.memory_space<vmem>>, vector<8x1xf32>,
    %c0_9 = arith.constant 0 : index
    %c0_10 = arith.constant 0 : index
    %18 = vector.load %arg5[%c0_9, %c0_10] : memref<8x1xf32, #tpu.memory_space<vmem>>, vector<8x1xf32>
    %cst_11 = arith.constant dense<0xFF800000> : vector<8xf32>
    %19 = vector.multi_reduction <maximumf>, %3, %cst_11 [1] : vector<8x32xf32> to vector<8xf32>
    %20 = vector.shape_cast %19 : vector<8xf32> to vector<8x1xf32>
    %21 = arith.maximumf %18, %20 : vector<8x1xf32>
    %c0_12 = arith.constant 0 : index
    %c0_13 = arith.constant 0 : index
    %22 = vector.load %arg6[%c0_12, %c0_13] : memref<8x1xf32, #tpu.memory_space<vmem>>, vector<8x1xf32>
    %23 = arith.subf %18, %21 : vector<8x1xf32>
    %24 = math.exp %23 : vector<8x1xf32>
    %25 = arith.mulf %22, %24 : vector<8x1xf32>
    %26 = vector.broadcast %21 : vector<8x1xf32> to vector<8x32xf32>
    %27 = arith.subf %3, %26 : vector<8x32xf32>
    %28 = math.exp %27 : vector<8x32xf32>
    %cst_14 = arith.constant dense<0.000000e+00> : vector<8xf32>
    %29 = vector.multi_reduction <add>, %28, %cst_14 [1] : vector<8x32xf32> to vector<8xf32>
    %30 = vector.shape_cast %29 : vector<8xf32> to vector<8x1xf32>
    %31 = arith.addf %25, %30 : vector<8x1xf32>
    %c0_15 = arith.constant 0 : index
    %c0_16 = arith.constant 0 : index
    %32 = vector.load %arg6[%c0_15, %c0_16] : memref<8x1xf32, #tpu.memory_space<vmem>>, vector<8x1xf32>
    tpu.vector_store %arg6[%c0_15, %c0_16], %31 {strides = array<i32>} : memref<8x1xf32, #tpu.memory_space<vmem>>, vector<8x1xf32>,
    %c0_17 = arith.constant 0 : index
    %c0_18 = arith.constant 0 : index
    %33 = vector.load %arg5[%c0_17, %c0_18] : memref<8x1xf32, #tpu.memory_space<vmem>>, vector<8x1xf32>
    tpu.vector_store %arg5[%c0_17, %c0_18], %21 {strides = array<i32>} : memref<8x1xf32, #tpu.memory_space<vmem>>, vector<8x1xf32>,
    %c0_i32_19 = arith.constant 0 : i32
    %34 = arith.cmpi eq, %arg1, %c0_i32_19 : i32
    %35 = arith.extui %34 : i1 to i32
    %c0_i32_20 = arith.constant 0 : i32
    %36 = arith.cmpi ne, %35, %c0_i32_20 : i32
    scf.if %36 {
      %c8_i32 = arith.constant 8 : i32
      %37 = arith.muli %arg0, %c8_i32 : i32
      %38 = tpu.iota {dimensions = array<i32: 0>} : vector<8x1xi32>
      %39 = vector.broadcast %37 : i32 to vector<8x1xi32>
      %40 = arith.addi %39, %38 : vector<8x1xi32>
      %c-100_i32 = arith.constant -100 : i32
      %41 = vector.broadcast %c-100_i32 : i32 to vector<8x1xi32>
      %42 = arith.cmpi ne, %4, %41 : vector<8x1xi32>
      %c8_i32_21 = arith.constant 8 : i32
      %43 = vector.broadcast %c8_i32_21 : i32 to vector<8x1xi32>
      %44 = arith.cmpi slt, %40, %43 : vector<8x1xi32>
      %45 = arith.andi %42, %44 : vector<8x1xi1>
      %c0_22 = arith.constant 0 : index
      %c0_23 = arith.constant 0 : index
      %46 = vector.load %arg5[%c0_22, %c0_23] : memref<8x1xf32, #tpu.memory_space<vmem>>, vector<8x1xf32>
      %c0_24 = arith.constant 0 : index
      %c0_25 = arith.constant 0 : index
      %47 = vector.load %arg6[%c0_24, %c0_25] : memref<8x1xf32, #tpu.memory_space<vmem>>, vector<8x1xf32>
      %48 = math.log %47 : vector<8x1xf32>
      %49 = arith.addf %46, %48 : vector<8x1xf32>
      %c0_26 = arith.constant 0 : index
      %c0_27 = arith.constant 0 : index
      %50 = vector.load %arg7[%c0_26, %c0_27] : memref<8x1xf32, #tpu.memory_space<vmem>>, vector<8x1xf32>
      %51 = arith.subf %49, %50 : vector<8x1xf32>
      %cst_28 = arith.constant 0.000000e+00 : f32
      %52 = vector.broadcast %cst_28 : f32 to vector<8x1xf32>
      %53 = arith.select %45, %51, %52 : vector<8x1xi1>, vector<8x1xf32>
      %c0_29 = arith.constant 0 : index
      %c0_30 = arith.constant 0 : index
      %54 = vector.load %arg4[%c0_29, %c0_30] : memref<8x1xf32, #tpu.memory_space<vmem>>, vector<8x1xf32>
      tpu.vector_store %arg4[%c0_29, %c0_30], %53 {strides = array<i32>} : memref<8x1xf32, #tpu.memory_space<vmem>>, vector<8x1xf32>,
    } else {
    }
    return
  }
  func.func @transform_0(%arg0: i32, %arg1: i32) -> (i32, i32) {
    %c0_i32 = arith.constant 0 : i32
    return %arg0, %arg1 : i32, i32
  }
  func.func @transform_1(%arg0: i32, %arg1: i32) -> (i32, i32) {
    %c0_i32 = arith.constant 0 : i32
    %c0_i32_0 = arith.constant 0 : i32
    return %arg0, %c0_i32 : i32, i32
  }
  func.func @transform_2(%arg0: i32, %arg1: i32) -> (i32, i32) {
    %c0_i32 = arith.constant 0 : i32
    %c0_i32_0 = arith.constant 0 : i32
    return %arg0, %c0_i32 : i32, i32
  }
}

</mosaic_0001>

<llo_original>
// kernel: tpu_custom_call.1
$region0: #{tpu_custom_call.1}
  #allocation0 [shape = 'u32[]', space=smem, size = 0x4, offset = 0x4, fixed_abs, tag = 'smem constant byte address 0x4 - core index']
  #allocation1 [shape = 'u32[144,128]{1,0:T(1,128)}', space=vmem, size = 0x12000, scoped, tag = 'internal scratch']
  #allocation2 [shape = 'f32[8,1]{1,0:T(8,128)}', space=vmem, size = 0x1000, scoped, tag = 'scratch operand']
  #allocation3 [shape = 'f32[8,1]{1,0:T(8,128)}', space=vmem, size = 0x1000, scoped, tag = 'scratch operand']
  #allocation4 [shape = 'f32[8,1]{1,0:T(8,128)}', space=vmem, size = 0x1000, scoped, tag = 'scratch operand']
  %s0 = inlined_call_operand.vmem [shape: f32[8,32], index: 0, kind: input, shape index: {}]
  %s1 = inlined_call_operand.vmem [shape: s32[8,1], index: 1, kind: input, shape index: {}]
  %s2 = inlined_call_operand.vmem [shape: f32[8,1], index: 2, kind: output, shape index: {}]
  %s3 = sld [smem:[#allocation0]]
  $region26: #{tpu_custom_call.1} parent=0
    _
  %s5 = ssub.s32 1, %s3
  %s6 = scalar_select 0, %s5, %s3
  // Predicated region
  $region2: #{tpu_custom_call.1} parent=0 // pred_check
    _
  $region3: #{tpu_custom_call.1} parent=0 // pred_check_branch
    %8 = sbr.rel (0) target = $region5
  $region4: #{tpu_custom_call.1} parent=0 // pred_region
    _
  $region5: #{tpu_custom_call.1} parent=0 // pred_fallthru
    _
  // Predicated region
  $region6: #{tpu_custom_call.1} parent=0 // pred_check
    _
  $region7: #{tpu_custom_call.1} parent=0 // pred_check_branch
    %10 = sbr.rel (0) target = $region9
  $region8: #{tpu_custom_call.1} parent=0 // pred_region
    _
  $region9: #{tpu_custom_call.1} parent=0 // pred_fallthru
    _
  %p11 = scmp.eq.s32.totalorder 0, 0
  // Predicated region
  $region10: #{tpu_custom_call.1} parent=0 // pred_check
    %p12 = pneg %p11
  $region11: #{tpu_custom_call.1} parent=0 // pred_check_branch
    %14 = sbr.rel (%p12) target = $region13
  $region12: #{tpu_custom_call.1} parent=0 // pred_region
    %vm15 = vcmask 7168
    %16 = vst.msk [vmem:[#allocation2] sm:$0xff] %vm15, -inf
    %17 = vst.msk [vmem:[#allocation3] sm:$0xff] %vm15, 0.0
    %18 = vst.msk [vmem:[#allocation4] sm:$0xff] %vm15, 0.0
  $region13: #{tpu_custom_call.1} parent=0 // pred_fallthru
    _
  %v19 = vld [vmem:[%s0] sm:$0xff]
  %v20 = vld [vmem:[%s1] sm:$0xff]
  %v21 = vlaneseq
  %v22 = vand.u32 %v21, 127
  %s23 = smul.u32 0, 32
  %v24 = vstv %s23
  %v25 = vsub.s32 %v20, %v24
  %v26 = vld [vmem:[#allocation4] sm:$0xff]
  %27 = vset.pattern.permute.xlu0 0
  %28 = vperm.xlu0 %27, %v25
  %v29 = vpop.permute.xlu0 %28
  %vm30 = vcmp.eq.s32.totalorder %v22, %v29
  %v31 = vsel %vm30, %v19, 0.0
  %vm32 = vcmask 261120
  %v33 = vsel %vm32, %v31, 0.0
  %34 = vadd.xlane.f32.xlu0 %v33
  %v35 = vpop.xlane.xlu0 %34
  %v36 = vadd.f32 %v26, %v35
  %vm37 = vcmask 7168
  %38 = vst.msk [vmem:[#allocation4] sm:$0xff] %vm37, %v36
  %v39 = vld [vmem:[#allocation2] sm:$0xff]
  %v40 = vsel %vm32, %v19, -inf
  %41 = vmax.xlane.f32.xlu0 %v40
  %v42 = vpop.xlane.xlu0 %41
  %v43 = vmax.f32 %v39, %v42
  %v44 = vld [vmem:[#allocation3] sm:$0xff]
  %v45 = vsub.f32 %v39, %v43
  %v46 = vmul.f32 %v45, 1.442695
  %v47 = vpow.pop %v46
  %v48 = vmul.f32 %v44, %v47
  %50 = vset.pattern.permute.xlu0 0
  %51 = vperm.xlu0 %50, %v43
  %v52 = vpop.permute.xlu0 %51
  %v54 = vsub.f32 %v19, %v52
  %v55 = vmul.f32 %v54, 1.442695
  %v56 = vpow.pop %v55
  %v57 = vsel %vm32, %v56, 0.0
  %58 = vadd.xlane.f32.xlu0 %v57
  %v59 = vpop.xlane.xlu0 %58
  %v60 = vadd.f32 %v48, %v59
  %61 = vst.msk [vmem:[#allocation3] sm:$0xff] %vm37, %v60
  %62 = vst.msk [vmem:[#allocation2] sm:$0xff] %vm37, %v43
  // Predicated region
  $region14: #{tpu_custom_call.1} parent=0 // pred_check
    %p63 = pneg %p11
  $region15: #{tpu_custom_call.1} parent=0 // pred_check_branch
    %65 = sbr.rel (%p63) target = $region17
  $region16: #{tpu_custom_call.1} parent=0 // pred_region
    %s66 = smul.u32 0, 8
    %v67 = vlaneseq
    %v68 = vshrl.u32 %v67, 7
    %v69 = vstv %s66
    %v70 = vadd.s32 %v69, %v68
    %vm71 = vcmp.ne.s32.totalorder %v20, 4294967196
    %vm72 = vcmp.lt.s32.totalorder %v70, 8
    %vm73 = vmand %vm71, %vm72
    %v74 = vld [vmem:[#allocation2] sm:$0xff]
    %v75 = vld [vmem:[#allocation3] sm:$0xff]
    %v76 = vlog2.pop %v75
    %v77 = vmul.f32 %v76, 0.6931472
    %v78 = vadd.f32 %v74, %v77
    %v79 = vld [vmem:[#allocation4] sm:$0xff]
    %v80 = vsub.f32 %v78, %v79
    %v81 = vsel %vm73, %v80, 0.0
    %82 = vst.msk [vmem:[%s2] sm:$0xff] %vm37, %v81
  $region17: #{tpu_custom_call.1} parent=0 // pred_fallthru
    _
  // Predicated region
  $region18: #{tpu_custom_call.1} parent=0 // pred_check
    _
  $region19: #{tpu_custom_call.1} parent=0 // pred_check_branch
    %84 = sbr.rel (0) target = $region21
  $region20: #{tpu_custom_call.1} parent=0 // pred_region
    _
  $region21: #{tpu_custom_call.1} parent=0 // pred_fallthru
    _
  // Predicated region
  $region22: #{tpu_custom_call.1} parent=0 // pred_check
    _
  $region23: #{tpu_custom_call.1} parent=0 // pred_check_branch
    %86 = sbr.rel (0) target = $region25
  $region24: #{tpu_custom_call.1} parent=0 // pred_region
    _
  $region25: #{tpu_custom_call.1} parent=0 // pred_fallthru
    _

</llo_original>
